<compile_context>
chip_gen: v5e
topology: v5e:2x2
jax: 0.10.0
libtpu: 0.0.40
codegen_flags: <defaults>
</compile_context>

<pallas_src>
import functools

import jax
import jax.numpy as jnp
from jax import lax
from jax.experimental import pallas as pl
from jax.experimental.pallas import tpu as pltpu


def _round_up(x, m):
    return (x + m - 1) // m * m


def _diag_kernel(im_ref, s_ref, diag_ref):
    # diag[i] = <im_i, s_i>: elementwise multiply + one lane reduce over (t, D).
    prod = im_ref[...].astype(jnp.float32) * s_ref[...].astype(jnp.float32)
    diag_ref[...] = jnp.sum(prod, axis=-1, keepdims=True)


def _loss_kernel(diag_r_ref, diag_c_ref, im_ref, s_ref, psum_ref, *,
                 margin, n_valid, tm, tn):
    i = pl.program_id(0)
    j = pl.program_id(1)

    # Output block (i, 0) is resident across the whole j (reduction) axis:
    # zero it at the first j step, accumulate partial row sums afterwards.
    @pl.when(j == 0)
    def _():
        psum_ref[...] = jnp.zeros_like(psum_ref)

    # (tm, tn) score tile: contract last axis of both operands (no s.T).
    scores = lax.dot_general(
        im_ref[...], s_ref[...],
        dimension_numbers=(((1,), (1,)), ((), ())),
        preferred_element_type=jnp.float32)

    d_row = diag_r_ref[...].astype(jnp.float32)   # (tm, 1) -> implicit broadcast
    d_col = diag_c_ref[...].astype(jnp.float32)   # (1, tn) -> implicit broadcast

    # Fused two-sided hinge.
    ms = scores + margin
    hinge = jnp.maximum(ms - d_row, 0.0) + jnp.maximum(ms - d_col, 0.0)

    # Zero the diagonal and any zero-padded rows/cols with one select.
    grow = i * tm + lax.broadcasted_iota(jnp.int32, (tm, tn), 0)
    gcol = j * tn + lax.broadcasted_iota(jnp.int32, (tm, tn), 1)
    invalid = (grow == gcol) | (grow >= n_valid) | (gcol >= n_valid)
    hinge = jnp.where(invalid, 0.0, hinge)

    # Per-row partial sums (lane reduce only); final reduce happens in wrapper.
    psum_ref[...] += jnp.sum(hinge, axis=1, keepdims=True)


def contrastive_loss(im, s, margin=0.0, scores=None, *, max_violation=False):
    """im, s: (B, D).  Returns the scalar f32 contrastive loss."""
    del scores  # forward() overwrites it with sim(im, s)
    # TODO(synk): max_violation=True (row/col max) branch not implemented;
    # the module's default constructor uses max_violation=False.
    assert not max_violation
    assert im.ndim == 2 and im.shape == s.shape
    B, D = im.shape

    # Pad D to a lane-aligned multiple of 128 (zero padding is exact for inner
    # products); pad B to the tile size (padded rows/cols masked in-kernel).
    Dp = _round_up(max(D, 128), 128)
    if B > 256:
        t = 256            # 256-aligned tiles keep the v6e/v7x 256x256 MXU full
    elif B > 128:
        t = 128            # 128-aligned (also the v5e MXU width)
    else:
        t = _round_up(B, 8)
    Bp = _round_up(B, t)

    pad_b, pad_d = Bp - B, Dp - D
    if pad_b or pad_d:
        im = jnp.pad(im, ((0, pad_b), (0, pad_d)))
        s = jnp.pad(s, ((0, pad_b), (0, pad_d)))

    nb = Bp // t

    # --- 1) diagonal: diag[i] = <im_i, s_i>, tiled over row blocks ----------
    diag = pl.pallas_call(
        _diag_kernel,
        out_shape=jax.ShapeDtypeStruct((Bp, 1), jnp.float32),
        grid_spec=pltpu.PrefetchScalarGridSpec(
            num_scalar_prefetch=0,
            grid=(nb,),
            in_specs=[pl.BlockSpec((t, Dp), lambda r: (r, 0)),
                      pl.BlockSpec((t, Dp), lambda r: (r, 0))],
            out_specs=pl.BlockSpec((t, 1), lambda r: (r, 0)),
        ),
        compiler_params=pltpu.CompilerParams(
            dimension_semantics=("parallel",)),
    )(im, s)

    diag_row = diag                    # (Bp, 1): per-row diagonal
    diag_col = diag.reshape(1, Bp)     # (1, Bp): per-col diagonal (once, in XLA)

    # --- 2) tiled hinge loss over (i, j) score blocks ------------------------
    kernel = functools.partial(_loss_kernel, margin=float(margin),
                               n_valid=B, tm=t, tn=t)
    psum = pl.pallas_call(
        kernel,
        out_shape=jax.ShapeDtypeStruct((Bp, 1), jnp.float32),
        grid_spec=pltpu.PrefetchScalarGridSpec(
            num_scalar_prefetch=0,
            grid=(nb, nb),
            in_specs=[
                pl.BlockSpec((t, 1), lambda i, j: (i, 0)),    # diag for rows
                pl.BlockSpec((1, t), lambda i, j: (0, j)),    # diag for cols
                pl.BlockSpec((t, Dp), lambda i, j: (i, 0)),   # im row tile
                pl.BlockSpec((t, Dp), lambda i, j: (j, 0)),   # s  col tile
            ],
            out_specs=pl.BlockSpec((t, 1), lambda i, j: (i, 0)),  # per-row psum
        ),
        compiler_params=pltpu.CompilerParams(
            # i axis is independent (per-row-tile partial sums) -> parallel,
            # j axis is the reduction into the resident output -> arbitrary.
            dimension_semantics=("parallel", "arbitrary")),
    )(diag_row, diag_col, im, s)

    return jnp.sum(psum)


def _reference(im, s, margin=0.0):
    scores = im.astype(jnp.float32) @ s.astype(jnp.float32).T
    diag = jnp.diag(scores)[:, None]
    eye = jnp.eye(scores.shape[0], dtype=bool)
    cost_s = jnp.where(eye, 0.0, jnp.maximum(margin + scores - diag, 0.0))
    cost_im = jnp.where(eye, 0.0, jnp.maximum(margin + scores - diag.T, 0.0))
    return cost_s.sum() + cost_im.sum()


if __name__ == "__main__":
    # B=200, D=96 -> padded to (256, 128), grid (2, 2): exercises tiling,
    # D-padding and the batch pad/diagonal mask, while staying small.
    B, D = 200, 96
    key = jax.random.PRNGKey(0)
    k_im, k_s = jax.random.split(key)
    im = jax.random.normal(k_im, (B, D), dtype=jnp.float32)
    s = jax.random.normal(k_s, (B, D), dtype=jnp.float32)
    # L2-normalize (as the surrounding VSE model would).
    im = im / jnp.linalg.norm(im, axis=-1, keepdims=True)
    s = s / jnp.linalg.norm(s, axis=-1, keepdims=True)

    margin = 0.2
    loss = contrastive_loss(im, s, margin=margin)
    loss = jax.block_until_ready(loss)

    ref = _reference(im, s, margin=margin)
    assert jnp.allclose(loss, ref, rtol=1e-3, atol=1e-3), (loss, ref)
    print("KERNEL_OK")
</pallas_src>

<mosaic_0001>
module attributes {stable_mosaic.version = 11 : i64} {
  func.func @_diag_kernel(%arg0: i32, %arg1: memref<128x128xf32, #tpu.memory_space<vmem>>, %arg2: memref<128x128xf32, #tpu.memory_space<vmem>>, %arg3: memref<128x1xf32, #tpu.memory_space<vmem>>) attributes {dimension_semantics = [#tpu.dimension_semantics<parallel>], iteration_bounds = array<i64: 2>, scalar_prefetch = 0 : i64, scratch_operands = 0 : i64, tpu.core_type = #tpu.core_type<tc>, window_params = [{transform_indices = @transform_0, window_bounds = array<i64: 128, 128>}, {transform_indices = @transform_1, window_bounds = array<i64: 128, 128>}, {transform_indices = @transform_2, window_bounds = array<i64: 128, 1>}]} {
    %c0 = arith.constant 0 : index
    %c0_0 = arith.constant 0 : index
    %0 = vector.load %arg1[%c0, %c0_0] : memref<128x128xf32, #tpu.memory_space<vmem>>, vector<128x128xf32>
    %c0_1 = arith.constant 0 : index
    %c0_2 = arith.constant 0 : index
    %1 = vector.load %arg2[%c0_1, %c0_2] : memref<128x128xf32, #tpu.memory_space<vmem>>, vector<128x128xf32>
    %2 = arith.mulf %0, %1 : vector<128x128xf32>
    %cst = arith.constant dense<0.000000e+00> : vector<128xf32>
    %3 = vector.multi_reduction <add>, %2, %cst [1] : vector<128x128xf32> to vector<128xf32>
    %4 = vector.shape_cast %3 : vector<128xf32> to vector<128x1xf32>
    %c0_3 = arith.constant 0 : index
    %c0_4 = arith.constant 0 : index
    %5 = vector.load %arg3[%c0_3, %c0_4] : memref<128x1xf32, #tpu.memory_space<vmem>>, vector<128x1xf32>
    tpu.vector_store %arg3[%c0_3, %c0_4], %4 {strides = array<i32>} : memref<128x1xf32, #tpu.memory_space<vmem>>, vector<128x1xf32>,
    return
  }
  func.func @transform_0(%arg0: i32) -> (i32, i32) {
    %c0_i32 = arith.constant 0 : i32
    %c0_i32_0 = arith.constant 0 : i32
    return %arg0, %c0_i32 : i32, i32
  }
  func.func @transform_1(%arg0: i32) -> (i32, i32) {
    %c0_i32 = arith.constant 0 : i32
    %c0_i32_0 = arith.constant 0 : i32
    return %arg0, %c0_i32 : i32, i32
  }
  func.func @transform_2(%arg0: i32) -> (i32, i32) {
    %c0_i32 = arith.constant 0 : i32
    %c0_i32_0 = arith.constant 0 : i32
    return %arg0, %c0_i32 : i32, i32
  }
}

</mosaic_0001>

<llo_original>
// kernel: tpu_custom_call.1
$region0: #{tpu_custom_call.1}
  #allocation0 [shape = 'u32[]', space=smem, size = 0x4, offset = 0x4, fixed_abs, tag = 'smem constant byte address 0x4 - core index']
  #allocation1 [shape = 'u32[72,128]{1,0:T(1,128)}', space=vmem, size = 0x9000, scoped, tag = 'internal scratch']
  %s0 = inlined_call_operand.hbm [shape: f32[256,128], index: 0, kind: input, shape index: {}]
  %s1 = inlined_call_operand.hbm [shape: f32[256,128], index: 1, kind: input, shape index: {}]
  %s2 = inlined_call_operand.vmem [shape: f32[256,1], index: 2, kind: output, shape index: {}]
  %s3 = sld [smem:[#allocation0]]
  $region49: #{tpu_custom_call.1} parent=0
    _
  %s5 = ssub.s32 1, %s3
  %s6 = scalar_select 0, %s5, %s3
  $region1: #{tpu_custom_call.1} parent=0
    #allocation2 [shape = 'u8[131072]{0}', space=vmem, size = 0x20000, scoped, tag = 'input window, operand 0']
    #allocation3 [shape = 's32[2]{0}', space=sflag, size = 0x8, scoped, tag = 'scoped memory for tpu_custom_call.1']
    #allocation4 [shape = 'u8[131072]{0}', space=vmem, size = 0x20000, scoped, tag = 'input window, operand 1']
    #allocation5 [shape = 's32[2]{0}', space=sflag, size = 0x8, scoped, tag = 'scoped memory for tpu_custom_call.1']
    %7 = vsyncpa [#allocation3], 0
    %s8 = scalar_lea.sflag [#allocation3], 1
    %9 = vsyncpa %s8, 0
    %10 = vsyncpa [#allocation5], 0
    %s11 = scalar_lea.sflag [#allocation5], 1
    %12 = vsyncpa %s11, 0
    loop: start=0, step=1, limit=4
    $region2: #{tpu_custom_call.1} parent=1 // loop_pre_header
      _
    $region3: #{tpu_custom_call.1} parent=1 // loop_header
      %s14 = sphi 0, %s18
      %p15 = scmp.ge.s32.totalorder %s14, 4
      %s24 = sphi 0, %s26
      %s27 = sphi 0, %s24
      %s28 = sphi 0, %s27
      %s44 = sphi 0, %s28
      %s50 = sphi 0, %s52
      %s53 = sphi 0, %s50
      %s54 = sphi 0, %s53
      %s70 = sphi 0, %s54
      %s76 = sphi 0, %s78
      %s79 = sphi 0, %s76
      %s80 = sphi 0, %s79
      %s96 = sphi 0, %s80
    $region4: #{tpu_custom_call.1} parent=1 // loop_header_branch
      %17 = sbr.rel (%p15) target = $region8
    $region5: #{tpu_custom_call.1} parent=1 // loop_body
      %s19 = ssub.s32 %s14, 1
      %s20 = ssub.s32 %s14, 2
      %s21 = sadd.s32 %s14, 1
      %s22 = ssub.s32 %s14, %s21
      %p23 = scmp.eq.s32.totalorder %s22, 0
      %s25 = sadd.s32 %s24, 1
      %s26 = scalar_select %p23, %s24, %s25
      %p29 = pneg %p23
      %p30 = scmp.eq.s32.totalorder %s14, 1
      %p31 = por %p29, %p30
      %p32 = scmp.ne.s32.totalorder %s24, %s27
      %p33 = scmp.eq.s32.totalorder %s14, 0
      %p34 = por %p32, %p33
      %p35 = scmp.ne.s32.totalorder %s24, %s27
      %p36 = scmp.eq.s32.totalorder %s19, 1
      %p37 = por %p35, %p36
      %p38 = scmp.ne.s32.totalorder %s27, %s28
      %p39 = scmp.eq.s32.totalorder %s19, 0
      %p40 = por %p38, %p39
      %p41 = scmp.ne.s32.totalorder %s27, %s28
      %p42 = scmp.eq.s32.totalorder %s20, 1
      %p43 = por %p41, %p42
      %p45 = scmp.ne.s32.totalorder %s28, %s44
      %p46 = scmp.eq.s32.totalorder %s20, 0
      %p47 = por %p45, %p46
      %s48 = ssub.s32 %s14, %s21
      %p49 = scmp.eq.s32.totalorder %s48, 0
      %s51 = sadd.s32 %s50, 1
      %s52 = scalar_select %p49, %s50, %s51
      %p55 = pneg %p49
      %p56 = scmp.eq.s32.totalorder %s14, 1
      %p57 = por %p55, %p56
      %p58 = scmp.ne.s32.totalorder %s50, %s53
      %p59 = scmp.eq.s32.totalorder %s14, 0
      %p60 = por %p58, %p59
      %p61 = scmp.ne.s32.totalorder %s50, %s53
      %p62 = scmp.eq.s32.totalorder %s19, 1
      %p63 = por %p61, %p62
      %p64 = scmp.ne.s32.totalorder %s53, %s54
      %p65 = scmp.eq.s32.totalorder %s19, 0
      %p66 = por %p64, %p65
      %p67 = scmp.ne.s32.totalorder %s53, %s54
      %p68 = scmp.eq.s32.totalorder %s20, 1
      %p69 = por %p67, %p68
      %p71 = scmp.ne.s32.totalorder %s54, %s70
      %p72 = scmp.eq.s32.totalorder %s20, 0
      %p73 = por %p71, %p72
      %s74 = ssub.s32 %s14, %s21
      %p75 = scmp.eq.s32.totalorder %s74, 0
      %s77 = sadd.s32 %s76, 1
      %s78 = scalar_select %p75, %s76, %s77
      %p81 = pneg %p75
      %p82 = scmp.eq.s32.totalorder %s14, 1
      %p83 = por %p81, %p82
      %p84 = scmp.ne.s32.totalorder %s76, %s79
      %p85 = scmp.eq.s32.totalorder %s14, 0
      %p86 = por %p84, %p85
      %p87 = scmp.ne.s32.totalorder %s76, %s79
      %p88 = scmp.eq.s32.totalorder %s19, 1
      %p89 = por %p87, %p88
      %p90 = scmp.ne.s32.totalorder %s79, %s80
      %p91 = scmp.eq.s32.totalorder %s19, 0
      %p92 = por %p90, %p91
      %p93 = scmp.ne.s32.totalorder %s79, %s80
      %p94 = scmp.eq.s32.totalorder %s20, 1
      %p95 = por %p93, %p94
      %p97 = scmp.ne.s32.totalorder %s80, %s96
      %p98 = scmp.eq.s32.totalorder %s20, 0
      %p99 = por %p97, %p98
      %p100 = scmp.le.s32.totalorder 1, %s14
      %p101 = scmp.lt.s32.totalorder %s14, 3
      %p102 = pnand %p100, %p101
      %p103 = pneg %p102
      // Predicated region
      $region9: #{tpu_custom_call.1} parent=5 // pred_check
        _
      $region10: #{tpu_custom_call.1} parent=5 // pred_check_branch
        %105 = sbr.rel (%p102) target = $region12
      $region11: #{tpu_custom_call.1} parent=5 // pred_region
        %s106 = ssub.s32 %s14, 1
      $region12: #{tpu_custom_call.1} parent=5 // pred_fallthru
        _
      %p107 = scmp.lt.s32.totalorder %s14, 2
      // Predicated region
      $region13: #{tpu_custom_call.1} parent=5 // pred_check
        %p108 = pneg %p107
      $region14: #{tpu_custom_call.1} parent=5 // pred_check_branch
        %110 = sbr.rel (%p108) target = $region16
      $region15: #{tpu_custom_call.1} parent=5 // pred_region
        // Predicated region
        $region17: #{tpu_custom_call.1} parent=15 // pred_check
          %p111 = pneg %p34
        $region18: #{tpu_custom_call.1} parent=15 // pred_check_branch
          %113 = sbr.rel (%p111) target = $region20
        $region19: #{tpu_custom_call.1} parent=15 // pred_region
          %s114 = sand.u32 %s24, 1
          %s115 = scalar_lea.sflag [#allocation3], %s114
          %s116 = sand.u32 %s24, 1
          %s117 = smul.addr %s116, 128
          %s118 = scalar_lea.vmem [#allocation2], %s117
          %s119 = smul.u32 16, %s14
          %121 = vsyncadd %s115, 0
          %s122 = smul.addr %s119, 8
          %s123 = scalar_lea.hbm %s0, %s122
          %s124 = sshll.u32 %s123, 4
          %s125 = int_to_ptr.hbm [resolvable:$true] %s124
          %s126 = sshll.u32 %s118, 4
          %s127 = int_to_ptr.vmem [resolvable:$true] %s126
          %132 = dma.hbm_to_vmem [thread:$0]  %s125, 2048, %s127, %s115, 128, 128, 8
        $region20: #{tpu_custom_call.1} parent=15 // pred_fallthru
          _
        // Predicated region
        $region21: #{tpu_custom_call.1} parent=15 // pred_check
          %p133 = pneg %p60
        $region22: #{tpu_custom_call.1} parent=15 // pred_check_branch
          %135 = sbr.rel (%p133) target = $region24
        $region23: #{tpu_custom_call.1} parent=15 // pred_region
          %s136 = sand.u32 %s50, 1
          %s137 = scalar_lea.sflag [#allocation5], %s136
          %s138 = sand.u32 %s50, 1
          %s139 = smul.addr %s138, 128
          %s140 = scalar_lea.vmem [#allocation4], %s139
          %s141 = smul.u32 16, %s14
          %143 = vsyncadd %s137, 0
          %s144 = smul.addr %s141, 8
          %s145 = scalar_lea.hbm %s1, %s144
          %s146 = sshll.u32 %s145, 4
          %s147 = int_to_ptr.hbm [resolvable:$true] %s146
          %s148 = sshll.u32 %s140, 4
          %s149 = int_to_ptr.vmem [resolvable:$true] %s148
          %154 = dma.hbm_to_vmem [thread:$0]  %s147, 2048, %s149, %s137, 128, 128, 8
        $region24: #{tpu_custom_call.1} parent=15 // pred_fallthru
          _
      $region16: #{tpu_custom_call.1} parent=5 // pred_fallthru
        _
      %p155 = scmp.le.s32.totalorder 1, %s14
      %p156 = scmp.lt.s32.totalorder %s14, 3
      %p157 = pnand %p155, %p156
      %p158 = pneg %p157
      // Predicated region
      $region25: #{tpu_custom_call.1} parent=5 // pred_check
        _
      $region26: #{tpu_custom_call.1} parent=5 // pred_check_branch
        %160 = sbr.rel (%p157) target = $region28
      $region27: #{tpu_custom_call.1} parent=5 // pred_region
        %s161 = ssub.s32 %s14, 1
        %s162 = sand.u32 %s27, 1
        %s163 = scalar_lea.sflag [#allocation3], %s162
        %s164 = sand.u32 %s27, 1
        %s165 = smul.addr %s164, 128
        %s166 = scalar_lea.vmem [#allocation2], %s165
        // Predicated region
        $region29: #{tpu_custom_call.1} parent=27 // pred_check
          %p167 = pneg %p40
        $region30: #{tpu_custom_call.1} parent=27 // pred_check_branch
          %169 = sbr.rel (%p167) target = $region32
        $region31: #{tpu_custom_call.1} parent=27 // pred_region
          %171 = dma.done %s163, 2048
        $region32: #{tpu_custom_call.1} parent=27 // pred_fallthru
          _
        %s172 = sand.u32 %s53, 1
        %s173 = scalar_lea.sflag [#allocation5], %s172
        %s174 = sand.u32 %s53, 1
        %s175 = smul.addr %s174, 128
        %s176 = scalar_lea.vmem [#allocation4], %s175
        // Predicated region
        $region33: #{tpu_custom_call.1} parent=27 // pred_check
          %p177 = pneg %p66
        $region34: #{tpu_custom_call.1} parent=27 // pred_check_branch
          %179 = sbr.rel (%p177) target = $region36
        $region35: #{tpu_custom_call.1} parent=27 // pred_region
          %181 = dma.done %s173, 2048
        $region36: #{tpu_custom_call.1} parent=27 // pred_fallthru
          _
        %s182 = sand.u32 %s27, 1
        %s183 = scalar_lea.sflag [#allocation3], %s182
        %s184 = sand.u32 %s27, 1
        %s185 = smul.addr %s184, 128
        %s186 = scalar_lea.vmem [#allocation2], %s185
        %p187 = pneg %p40
        %p188 = pneg %p37
        %s189 = sand.u32 %s53, 1
        %s190 = scalar_lea.sflag [#allocation5], %s189
        %s191 = sand.u32 %s53, 1
        %s192 = smul.addr %s191, 128
        %s193 = scalar_lea.vmem [#allocation4], %s192
        %p194 = pneg %p66
        %p195 = pneg %p63
        %p196 = pneg %p92
        %p197 = pneg %p89
        %s198 = smul.u32 16, %s19
        %p199 = scmp.lt.s32.totalorder %s198, 31
        %s200 = scalar_select %p199, %s198, 31
        %s201 = smul.addr %s200, 8
        %s202 = scalar_lea.vmem %s2, %s201
        %s203 = smul.u32 16, %s19
        %s204 = smul.u32 16, %s19
        %s205 = smul.u32 16, %s19
        %p206 = scmp.lt.s32.totalorder %s205, 31
        %s207 = scalar_select %p206, %s205, 31
        %s208 = smul.addr %s207, 8
        %s209 = scalar_lea.vmem %s2, %s208
        %s210 = smul.u32 16, %s19
        %v211 = vld [vmem:[%s166] sm:$0xff]
        %v212 = vld [vmem:[%s166 + $0x8] sm:$0xff]
        %v213 = vld [vmem:[%s166 + $0x10] sm:$0xff]
        %v214 = vld [vmem:[%s166 + $0x18] sm:$0xff]
        %v215 = vld [vmem:[%s166 + $0x20] sm:$0xff]
        %v216 = vld [vmem:[%s166 + $0x28] sm:$0xff]
        %v217 = vld [vmem:[%s166 + $0x30] sm:$0xff]
        %v218 = vld [vmem:[%s166 + $0x38] sm:$0xff]
        %v219 = vld [vmem:[%s166 + $0x40] sm:$0xff]
        %v220 = vld [vmem:[%s166 + $0x48] sm:$0xff]
        %v221 = vld [vmem:[%s166 + $0x50] sm:$0xff]
        %v222 = vld [vmem:[%s166 + $0x58] sm:$0xff]
        %v223 = vld [vmem:[%s166 + $0x60] sm:$0xff]
        %v224 = vld [vmem:[%s166 + $0x68] sm:$0xff]
        %v225 = vld [vmem:[%s166 + $0x70] sm:$0xff]
        %v226 = vld [vmem:[%s166 + $0x78] sm:$0xff]
        %v227 = vld [vmem:[%s176] sm:$0xff]
        %v228 = vld [vmem:[%s176 + $0x8] sm:$0xff]
        %v229 = vld [vmem:[%s176 + $0x10] sm:$0xff]
        %v230 = vld [vmem:[%s176 + $0x18] sm:$0xff]
        %v231 = vld [vmem:[%s176 + $0x20] sm:$0xff]
        %v232 = vld [vmem:[%s176 + $0x28] sm:$0xff]
        %v233 = vld [vmem:[%s176 + $0x30] sm:$0xff]
        %v234 = vld [vmem:[%s176 + $0x38] sm:$0xff]
        %v235 = vld [vmem:[%s176 + $0x40] sm:$0xff]
        %v236 = vld [vmem:[%s176 + $0x48] sm:$0xff]
        %v237 = vld [vmem:[%s176 + $0x50] sm:$0xff]
        %v238 = vld [vmem:[%s176 + $0x58] sm:$0xff]
        %v239 = vld [vmem:[%s176 + $0x60] sm:$0xff]
        %v240 = vld [vmem:[%s176 + $0x68] sm:$0xff]
        %v241 = vld [vmem:[%s176 + $0x70] sm:$0xff]
        %v242 = vld [vmem:[%s176 + $0x78] sm:$0xff]
        %v243 = vmul.f32 %v211, %v227
        %v244 = vmul.f32 %v212, %v228
        %v245 = vmul.f32 %v213, %v229
        %v246 = vmul.f32 %v214, %v230
        %v247 = vmul.f32 %v215, %v231
        %v248 = vmul.f32 %v216, %v232
        %v249 = vmul.f32 %v217, %v233
        %v250 = vmul.f32 %v218, %v234
        %v251 = vmul.f32 %v219, %v235
        %v252 = vmul.f32 %v220, %v236
        %v253 = vmul.f32 %v221, %v237
        %v254 = vmul.f32 %v222, %v238
        %v255 = vmul.f32 %v223, %v239
        %v256 = vmul.f32 %v224, %v240
        %v257 = vmul.f32 %v225, %v241
        %v258 = vmul.f32 %v226, %v242
        %259 = vadd.xlane.f32.xlu0 %v243
        %v260 = vpop.xlane.xlu0 %259
        %261 = vadd.xlane.f32.xlu0 %v244
        %v262 = vpop.xlane.xlu0 %261
        %263 = vadd.xlane.f32.xlu0 %v245
        %v264 = vpop.xlane.xlu0 %263
        %265 = vadd.xlane.f32.xlu0 %v246
        %v266 = vpop.xlane.xlu0 %265
        %267 = vadd.xlane.f32.xlu0 %v247
        %v268 = vpop.xlane.xlu0 %267
        %269 = vadd.xlane.f32.xlu0 %v248
        %v270 = vpop.xlane.xlu0 %269
        %271 = vadd.xlane.f32.xlu0 %v249
        %v272 = vpop.xlane.xlu0 %271
        %273 = vadd.xlane.f32.xlu0 %v250
        %v274 = vpop.xlane.xlu0 %273
        %275 = vadd.xlane.f32.xlu0 %v251
        %v276 = vpop.xlane.xlu0 %275
        %277 = vadd.xlane.f32.xlu0 %v252
        %v278 = vpop.xlane.xlu0 %277
        %279 = vadd.xlane.f32.xlu0 %v253
        %v280 = vpop.xlane.xlu0 %279
        %281 = vadd.xlane.f32.xlu0 %v254
        %v282 = vpop.xlane.xlu0 %281
        %283 = vadd.xlane.f32.xlu0 %v255
        %v284 = vpop.xlane.xlu0 %283
        %285 = vadd.xlane.f32.xlu0 %v256
        %v286 = vpop.xlane.xlu0 %285
        %287 = vadd.xlane.f32.xlu0 %v257
        %v288 = vpop.xlane.xlu0 %287
        %289 = vadd.xlane.f32.xlu0 %v258
        %v290 = vpop.xlane.xlu0 %289
        %vm291 = vcmask 7168
        %292 = vst.msk [vmem:[%s209] sm:$0xff] %vm291, %v260
        %293 = vst.msk [vmem:[%s209 + $0x8] sm:$0xff] %vm291, %v262
        %294 = vst.msk [vmem:[%s209 + $0x10] sm:$0xff] %vm291, %v264
        %295 = vst.msk [vmem:[%s209 + $0x18] sm:$0xff] %vm291, %v266
        %296 = vst.msk [vmem:[%s209 + $0x20] sm:$0xff] %vm291, %v268
        %297 = vst.msk [vmem:[%s209 + $0x28] sm:$0xff] %vm291, %v270
        %298 = vst.msk [vmem:[%s209 + $0x30] sm:$0xff] %vm291, %v272
        %299 = vst.msk [vmem:[%s209 + $0x38] sm:$0xff] %vm291, %v274
        %300 = vst.msk [vmem:[%s209 + $0x40] sm:$0xff] %vm291, %v276
        %301 = vst.msk [vmem:[%s209 + $0x48] sm:$0xff] %vm291, %v278
        %302 = vst.msk [vmem:[%s209 + $0x50] sm:$0xff] %vm291, %v280
        %303 = vst.msk [vmem:[%s209 + $0x58] sm:$0xff] %vm291, %v282
        %304 = vst.msk [vmem:[%s209 + $0x60] sm:$0xff] %vm291, %v284
        %305 = vst.msk [vmem:[%s209 + $0x68] sm:$0xff] %vm291, %v286
        %306 = vst.msk [vmem:[%s209 + $0x70] sm:$0xff] %vm291, %v288
        %307 = vst.msk [vmem:[%s209 + $0x78] sm:$0xff] %vm291, %v290
        %s308 = smul.u32 16, %s19
        %p309 = scmp.lt.s32.totalorder %s308, 31
        %s310 = scalar_select %p309, %s308, 31
        %s311 = smul.addr %s310, 8
        %s312 = scalar_lea.vmem %s2, %s311
        // Predicated region
        $region37: #{tpu_custom_call.1} parent=27 // pred_check
          %p313 = pneg %p89
        $region38: #{tpu_custom_call.1} parent=27 // pred_check_branch
          %315 = sbr.rel (%p313) target = $region40
        $region39: #{tpu_custom_call.1} parent=27 // pred_region
          %s316 = smul.u32 16, %s19
        $region40: #{tpu_custom_call.1} parent=27 // pred_fallthru
          _
      $region28: #{tpu_custom_call.1} parent=5 // pred_fallthru
        _
      %p317 = scmp.le.s32.totalorder 2, %s14
      // Predicated region
      $region41: #{tpu_custom_call.1} parent=5 // pred_check
        %p318 = pneg %p317
      $region42: #{tpu_custom_call.1} parent=5 // pred_check_branch
        %320 = sbr.rel (%p318) target = $region44
      $region43: #{tpu_custom_call.1} parent=5 // pred_region
        %s321 = ssub.s32 %s14, 2
        // Predicated region
        $region45: #{tpu_custom_call.1} parent=43 // pred_check
          %p322 = pneg %p95
        $region46: #{tpu_custom_call.1} parent=43 // pred_check_branch
          %324 = sbr.rel (%p322) target = $region48
        $region47: #{tpu_custom_call.1} parent=43 // pred_region
          %s325 = smul.u32 16, %s20
          %p326 = scmp.lt.s32.totalorder %s325, 31
          %s327 = scalar_select %p326, %s325, 31
          %s328 = smul.addr %s327, 8
          %s329 = scalar_lea.vmem %s2, %s328
        $region48: #{tpu_custom_call.1} parent=43 // pred_fallthru
          _
      $region44: #{tpu_custom_call.1} parent=5 // pred_fallthru
        _
    $region6: #{tpu_custom_call.1} parent=1 // loop_footer
      %s18 = sadd.s32 1, %s14
    $region7: #{tpu_custom_call.1} parent=1 // loop_footer_branch
      %13 = sbr.rel target = $region3
    $region8: #{tpu_custom_call.1} parent=1 // loop_exit
      _
    %330 = vsyncpa [#allocation3], 1
    %s331 = scalar_lea.sflag [#allocation3], 1
    %332 = vsyncpa %s331, 1
    %333 = vsyncpa [#allocation5], 1
    %s334 = scalar_lea.sflag [#allocation5], 1
    %335 = vsyncpa %s334, 1

</llo_original>
